<compile_context>
chip_gen: v7x
topology: tpu7x:2x2x1
jax: 0.10.0
libtpu: 0.0.40
codegen_flags: <defaults>
</compile_context>

<pallas_src>
import jax
import jax.numpy as jnp
from jax.experimental import pallas as pl
from jax.experimental.pallas import tpu as pltpu


D_IN, D_H1, D_H2, D_OUT = 784, 16, 32, 10


def _round_up(n, m):
    return ((n + m - 1) // m) * m


def mlp_kernel(x_ref, w1_ref, b1_ref, w2_ref, b2_ref, w3_ref, b3_ref, o_ref):
    # x tile: (TB, 784) f32 from HBM; cast to bf16 in VMEM (no extra HBM pass).
    x = x_ref[...].astype(jnp.bfloat16)

    # fc1 + ReLU  (bf16 x bf16 -> f32 accumulate on the MXU)
    w1 = w1_ref[...].astype(jnp.bfloat16)
    h1 = jnp.dot(x, w1, preferred_element_type=jnp.float32)
    h1 = jnp.maximum(h1 + b1_ref[...], 0.0)                   # (TB, 16) f32

    # fc2 + ReLU  (tiny matmul; bf16 operands, f32 accumulate)
    w2 = w2_ref[...].astype(jnp.bfloat16)
    h2 = jnp.dot(h1.astype(jnp.bfloat16), w2,
                 preferred_element_type=jnp.float32)
    h2 = jnp.maximum(h2 + b2_ref[...], 0.0)                   # (TB, 32) f32

    # fc3 (no activation); output written unpadded as (TB, 10) f32.
    w3 = w3_ref[...].astype(jnp.bfloat16)
    h3 = jnp.dot(h2.astype(jnp.bfloat16), w3,
                 preferred_element_type=jnp.float32)
    o_ref[...] = (h3 + b3_ref[...]).astype(o_ref.dtype)       # (TB, 10) f32


def model3_forward(x, params, *, tile_batch=2048):
    """x: (B, 784) float32.  params: (w1, b1, w2, b2, w3, b3) in f32."""
    w1, b1, w2, b2, w3, b3 = params
    B = x.shape[0]

    # Batch tile: multiple of 16, capped at tile_batch; prefer >= 2 grid steps
    # when the batch allows so v7x megacore can shard the batch across its
    # two TensorCores.
    tb = _round_up(int(tile_batch), 16)
    tb = min(tb, max(16, _round_up(pl.cdiv(B, 2), 16)))
    grid = (pl.cdiv(B, tb),)   # ragged batch handled by a partial last block

    def const_spec(a):
        # Full-array block, same block for every grid step -> resident in VMEM.
        return pl.BlockSpec(a.shape, lambda i: (0,) * a.ndim)

    flops = 2 * B * (D_IN * D_H1 + D_H1 * D_H2 + D_H2 * D_OUT)
    bytes_accessed = (
        x.size * 4
        + (w1.size + b1.size + w2.size + b2.size + w3.size + b3.size) * 4
        + B * D_OUT * 4
    )

    out = pl.pallas_call(
        mlp_kernel,
        out_shape=jax.ShapeDtypeStruct((B, D_OUT), jnp.float32),
        grid=grid,
        in_specs=[
            pl.BlockSpec((tb, D_IN), lambda i: (i, 0)),   # x: tiled over batch
            const_spec(w1), const_spec(b1),               # parameters: resident
            const_spec(w2), const_spec(b2),
            const_spec(w3), const_spec(b3),
        ],
        out_specs=pl.BlockSpec((tb, D_OUT), lambda i: (i, 0)),
        compiler_params=pltpu.CompilerParams(
            dimension_semantics=("parallel",),            # megacore on v7x
            vmem_limit_bytes=32 * 1024 * 1024),           # headroom on v5e
        cost_estimate=pl.CostEstimate(
            flops=flops, transcendentals=0, bytes_accessed=bytes_accessed),
    )(x, w1, b1, w2, b2, w3, b3)

    return out


def init_params(key):
    """Deterministic init mimicking nn.Linear's uniform(-1/sqrt(in), 1/sqrt(in))."""
    dims = [(D_IN, D_H1), (D_H1, D_H2), (D_H2, D_OUT)]
    params = []
    for i, (fan_in, fan_out) in enumerate(dims):
        kw, kb = jax.random.split(jax.random.fold_in(key, i))
        bound = 1.0 / jnp.sqrt(jnp.float32(fan_in))
        w = jax.random.uniform(kw, (fan_in, fan_out), jnp.float32, -bound, bound)
        b = jax.random.uniform(kb, (1, fan_out), jnp.float32, -bound, bound)
        params.extend([w, b])
    return tuple(params)


def reference_forward(x, params):
    """Pure-JAX reference mirroring the kernel's dtype choices."""
    w1, b1, w2, b2, w3, b3 = params
    h = jnp.dot(x.astype(jnp.bfloat16), w1.astype(jnp.bfloat16),
                preferred_element_type=jnp.float32)
    h = jnp.maximum(h + b1, 0.0)
    h = jnp.dot(h.astype(jnp.bfloat16), w2.astype(jnp.bfloat16),
                preferred_element_type=jnp.float32)
    h = jnp.maximum(h + b2, 0.0)
    h = jnp.dot(h.astype(jnp.bfloat16), w3.astype(jnp.bfloat16),
                preferred_element_type=jnp.float32)
    return h + b3


if __name__ == "__main__":
    key = jax.random.PRNGKey(0)
    k_x, k_p = jax.random.split(key)
    params = init_params(k_p)

    # Small test (single grid step, batch smaller than one tile).
    B = 8
    x = jax.random.normal(k_x, (B, D_IN), dtype=jnp.float32)
    out = jax.block_until_ready(model3_forward(x, params))
    ref = reference_forward(x, params)
    assert out.shape == (B, D_OUT)
    assert jnp.allclose(out, ref, atol=1e-2, rtol=1e-2)

    # Multi-step grid + ragged batch (partial last block) path.
    B2 = 200
    x2 = jax.random.normal(jax.random.fold_in(k_x, 1), (B2, D_IN), jnp.float32)
    out2 = jax.block_until_ready(model3_forward(x2, params, tile_batch=64))
    ref2 = reference_forward(x2, params)
    assert out2.shape == (B2, D_OUT)
    assert jnp.allclose(out2, ref2, atol=1e-2, rtol=1e-2)

    print("KERNEL_OK")
</pallas_src>

<mosaic_0001>
module attributes {stable_mosaic.version = 11 : i64} {
  func.func @mlp_kernel(%arg0: i32, %arg1: memref<16x784xf32, #tpu.memory_space<vmem>>, %arg2: memref<784x16xf32, #tpu.memory_space<vmem>>, %arg3: memref<1x16xf32, #tpu.memory_space<vmem>>, %arg4: memref<16x32xf32, #tpu.memory_space<vmem>>, %arg5: memref<1x32xf32, #tpu.memory_space<vmem>>, %arg6: memref<32x10xf32, #tpu.memory_space<vmem>>, %arg7: memref<1x10xf32, #tpu.memory_space<vmem>>, %arg8: memref<16x10xf32, #tpu.memory_space<vmem>>) attributes {dimension_semantics = [#tpu.dimension_semantics<parallel>], iteration_bounds = array<i64: 1>, scalar_prefetch = 0 : i64, scratch_operands = 0 : i64, tpu.core_type = #tpu.core_type<tc>, window_params = [{transform_indices = @transform_0, window_bounds = array<i64: 16, 784>}, {pipeline_mode = #tpu.pipeline_mode<synchronous>, transform_indices = @transform_1, window_bounds = array<i64: 784, 16>}, {pipeline_mode = #tpu.pipeline_mode<synchronous>, transform_indices = @transform_2, window_bounds = array<i64: 1, 16>}, {pipeline_mode = #tpu.pipeline_mode<synchronous>, transform_indices = @transform_3, window_bounds = array<i64: 16, 32>}, {pipeline_mode = #tpu.pipeline_mode<synchronous>, transform_indices = @transform_4, window_bounds = array<i64: 1, 32>}, {pipeline_mode = #tpu.pipeline_mode<synchronous>, transform_indices = @transform_5, window_bounds = array<i64: 32, 10>}, {pipeline_mode = #tpu.pipeline_mode<synchronous>, transform_indices = @transform_6, window_bounds = array<i64: 1, 10>}, {transform_indices = @transform_7, window_bounds = array<i64: 16, 10>}]} {
    %c0 = arith.constant 0 : index
    %c0_0 = arith.constant 0 : index
    %0 = vector.load %arg1[%c0, %c0_0] : memref<16x784xf32, #tpu.memory_space<vmem>>, vector<16x784xf32>
    %1 = arith.truncf %0 : vector<16x784xf32> to vector<16x784xbf16>
    %c0_1 = arith.constant 0 : index
    %c0_2 = arith.constant 0 : index
    %2 = vector.load %arg2[%c0_1, %c0_2] : memref<784x16xf32, #tpu.memory_space<vmem>>, vector<784x16xf32>
    %3 = arith.truncf %2 : vector<784x16xf32> to vector<784x16xbf16>
    %cst = arith.constant dense<0.000000e+00> : vector<16x16xf32>
    %4 = tpu.matmul %1, %3, %cst {dimension_numbers = #tpu.dot_dimension_numbers<[1], [0], [0], [1], [0, 0, 1, 1], [], []>} : vector<16x784xbf16>, vector<784x16xbf16>, vector<16x16xf32> -> vector<16x16xf32>
    %c0_3 = arith.constant 0 : index
    %c0_4 = arith.constant 0 : index
    %5 = vector.load %arg3[%c0_3, %c0_4] : memref<1x16xf32, #tpu.memory_space<vmem>>, vector<1x16xf32>
    %6 = vector.broadcast %5 : vector<1x16xf32> to vector<16x16xf32>
    %7 = arith.addf %4, %6 : vector<16x16xf32>
    %cst_5 = arith.constant 0.000000e+00 : f32
    %8 = vector.broadcast %cst_5 : f32 to vector<16x16xf32>
    %9 = arith.maximumf %7, %8 : vector<16x16xf32>
    %c0_6 = arith.constant 0 : index
    %c0_7 = arith.constant 0 : index
    %10 = vector.load %arg4[%c0_6, %c0_7] : memref<16x32xf32, #tpu.memory_space<vmem>>, vector<16x32xf32>
    %11 = arith.truncf %10 : vector<16x32xf32> to vector<16x32xbf16>
    %12 = arith.truncf %9 : vector<16x16xf32> to vector<16x16xbf16>
    %cst_8 = arith.constant dense<0.000000e+00> : vector<16x32xf32>
    %13 = tpu.matmul %12, %11, %cst_8 {dimension_numbers = #tpu.dot_dimension_numbers<[1], [0], [0], [1], [0, 0, 1, 1], [], []>} : vector<16x16xbf16>, vector<16x32xbf16>, vector<16x32xf32> -> vector<16x32xf32>
    %c0_9 = arith.constant 0 : index
    %c0_10 = arith.constant 0 : index
    %14 = vector.load %arg5[%c0_9, %c0_10] : memref<1x32xf32, #tpu.memory_space<vmem>>, vector<1x32xf32>
    %15 = vector.broadcast %14 : vector<1x32xf32> to vector<16x32xf32>
    %16 = arith.addf %13, %15 : vector<16x32xf32>
    %cst_11 = arith.constant 0.000000e+00 : f32
    %17 = vector.broadcast %cst_11 : f32 to vector<16x32xf32>
    %18 = arith.maximumf %16, %17 : vector<16x32xf32>
    %c0_12 = arith.constant 0 : index
    %c0_13 = arith.constant 0 : index
    %19 = vector.load %arg6[%c0_12, %c0_13] : memref<32x10xf32, #tpu.memory_space<vmem>>, vector<32x10xf32>
    %20 = arith.truncf %19 : vector<32x10xf32> to vector<32x10xbf16>
    %21 = arith.truncf %18 : vector<16x32xf32> to vector<16x32xbf16>
    %cst_14 = arith.constant dense<0.000000e+00> : vector<16x10xf32>
    %22 = tpu.matmul %21, %20, %cst_14 {dimension_numbers = #tpu.dot_dimension_numbers<[1], [0], [0], [1], [0, 0, 1, 1], [], []>} : vector<16x32xbf16>, vector<32x10xbf16>, vector<16x10xf32> -> vector<16x10xf32>
    %c0_15 = arith.constant 0 : index
    %c0_16 = arith.constant 0 : index
    %23 = vector.load %arg7[%c0_15, %c0_16] : memref<1x10xf32, #tpu.memory_space<vmem>>, vector<1x10xf32>
    %24 = vector.broadcast %23 : vector<1x10xf32> to vector<16x10xf32>
    %25 = arith.addf %22, %24 : vector<16x10xf32>
    %c0_17 = arith.constant 0 : index
    %c0_18 = arith.constant 0 : index
    %26 = vector.load %arg8[%c0_17, %c0_18] : memref<16x10xf32, #tpu.memory_space<vmem>>, vector<16x10xf32>
    tpu.vector_store %arg8[%c0_17, %c0_18], %25 {strides = array<i32>} : memref<16x10xf32, #tpu.memory_space<vmem>>, vector<16x10xf32>,
    return
  }
  func.func @transform_0(%arg0: i32) -> (i32, i32) {
    %c0_i32 = arith.constant 0 : i32
    %c0_i32_0 = arith.constant 0 : i32
    return %arg0, %c0_i32 : i32, i32
  }
  func.func @transform_1(%arg0: i32) -> (i32, i32) {
    %c0_i32 = arith.constant 0 : i32
    %c0_i32_0 = arith.constant 0 : i32
    %c0_i32_1 = arith.constant 0 : i32
    return %c0_i32, %c0_i32_0 : i32, i32
  }
  func.func @transform_2(%arg0: i32) -> (i32, i32) {
    %c0_i32 = arith.constant 0 : i32
    %c0_i32_0 = arith.constant 0 : i32
    %c0_i32_1 = arith.constant 0 : i32
    return %c0_i32, %c0_i32_0 : i32, i32
  }
  func.func @transform_3(%arg0: i32) -> (i32, i32) {
    %c0_i32 = arith.constant 0 : i32
    %c0_i32_0 = arith.constant 0 : i32
    %c0_i32_1 = arith.constant 0 : i32
    return %c0_i32, %c0_i32_0 : i32, i32
  }
  func.func @transform_4(%arg0: i32) -> (i32, i32) {
    %c0_i32 = arith.constant 0 : i32
    %c0_i32_0 = arith.constant 0 : i32
    %c0_i32_1 = arith.constant 0 : i32
    return %c0_i32, %c0_i32_0 : i32, i32
  }
  func.func @transform_5(%arg0: i32) -> (i32, i32) {
    %c0_i32 = arith.constant 0 : i32
    %c0_i32_0 = arith.constant 0 : i32
    %c0_i32_1 = arith.constant 0 : i32
    return %c0_i32, %c0_i32_0 : i32, i32
  }
  func.func @transform_6(%arg0: i32) -> (i32, i32) {
    %c0_i32 = arith.constant 0 : i32
    %c0_i32_0 = arith.constant 0 : i32
    %c0_i32_1 = arith.constant 0 : i32
    return %c0_i32, %c0_i32_0 : i32, i32
  }
  func.func @transform_7(%arg0: i32) -> (i32, i32) {
    %c0_i32 = arith.constant 0 : i32
    %c0_i32_0 = arith.constant 0 : i32
    return %arg0, %c0_i32 : i32, i32
  }
}

</mosaic_0001>

<llo_original>
// kernel: tpu_custom_call.1
$region0: #{tpu_custom_call.1}
  #allocation0 [shape = 'u32[]', space=smem, size = 0x4, offset = 0x4, fixed_abs, tag = 'smem constant byte address 0x4 - core index']
  #allocation1 [shape = 'u32[144,128]{1,0:T(1,128)}', space=vmem, size = 0x12000, scoped, tag = 'internal scratch']
  %s0 = inlined_call_operand.vmem [shape: f32[8,784], index: 0, kind: input, shape index: {}]
  %s1 = inlined_call_operand.vmem [shape: f32[784,16], index: 1, kind: input, shape index: {}]
  %s2 = inlined_call_operand.vmem [shape: f32[1,16], index: 2, kind: input, shape index: {}]
  %s3 = inlined_call_operand.vmem [shape: f32[16,32], index: 3, kind: input, shape index: {}]
  %s4 = inlined_call_operand.vmem [shape: f32[1,32], index: 4, kind: input, shape index: {}]
  %s5 = inlined_call_operand.vmem [shape: f32[32,10], index: 5, kind: input, shape index: {}]
  %s6 = inlined_call_operand.vmem [shape: f32[1,10], index: 6, kind: input, shape index: {}]
  %s7 = inlined_call_operand.hbm [shape: f32[8,10], index: 7, kind: output, shape index: {}]
  %s8 = sld [smem:[#allocation0]]
  $region38: #{tpu_custom_call.1} parent=0
    _
  %s10 = ssub.s32 1, %s8
  %s11 = scalar_select 0, %s10, %s8
  $region1: #{tpu_custom_call.1} parent=0
    #allocation2 [shape = 'u8[8192]{0}', space=vmem, size = 0x2000, scoped, tag = 'output window, operand 0, single buffered']
    #allocation3 [shape = 's32[1]{0}', space=sflag, size = 0x4, scoped, tag = 'scoped memory for tpu_custom_call.1']
    %12 = vsyncpa [#allocation3], 0
    // Predicated region
    $region2: #{tpu_custom_call.1} parent=1 // pred_check
      _
    $region3: #{tpu_custom_call.1} parent=1 // pred_check_branch
      %14 = sbr.rel (0) target = $region5
    $region4: #{tpu_custom_call.1} parent=1 // pred_region
      _
    $region5: #{tpu_custom_call.1} parent=1 // pred_fallthru
      _
    // Predicated region
    $region6: #{tpu_custom_call.1} parent=1 // pred_check
      _
    $region7: #{tpu_custom_call.1} parent=1 // pred_check_branch
      %16 = sbr.rel (0) target = $region9
    $region8: #{tpu_custom_call.1} parent=1 // pred_region
      _
    $region9: #{tpu_custom_call.1} parent=1 // pred_fallthru
      _
    // Predicated region
    $region10: #{tpu_custom_call.1} parent=1 // pred_check
      _
    $region11: #{tpu_custom_call.1} parent=1 // pred_check_branch
      %18 = sbr.rel (0) target = $region13
    $region12: #{tpu_custom_call.1} parent=1 // pred_region
      _
    $region13: #{tpu_custom_call.1} parent=1 // pred_fallthru
      _
    // Predicated region
    $region14: #{tpu_custom_call.1} parent=1 // pred_check
      _
    $region15: #{tpu_custom_call.1} parent=1 // pred_check_branch
      %20 = sbr.rel (0) target = $region17
    $region16: #{tpu_custom_call.1} parent=1 // pred_region
      _
    $region17: #{tpu_custom_call.1} parent=1 // pred_fallthru
      _
    // Predicated region
    $region18: #{tpu_custom_call.1} parent=1 // pred_check
      _
    $region19: #{tpu_custom_call.1} parent=1 // pred_check_branch
      %22 = sbr.rel (0) target = $region21
    $region20: #{tpu_custom_call.1} parent=1 // pred_region
      _
    $region21: #{tpu_custom_call.1} parent=1 // pred_fallthru
      _
    // Predicated region
    $region22: #{tpu_custom_call.1} parent=1 // pred_check
      _
    $region23: #{tpu_custom_call.1} parent=1 // pred_check_branch
      %24 = sbr.rel (0) target = $region25
    $region24: #{tpu_custom_call.1} parent=1 // pred_region
      _
    $region25: #{tpu_custom_call.1} parent=1 // pred_fallthru
      _
    // Predicated region
    $region26: #{tpu_custom_call.1} parent=1 // pred_check
      _
    $region27: #{tpu_custom_call.1} parent=1 // pred_check_branch
      %26 = sbr.rel (0) target = $region29
    $region28: #{tpu_custom_call.1} parent=1 // pred_region
      _
    $region29: #{tpu_custom_call.1} parent=1 // pred_fallthru
      _
    %v28 = vld [vmem:[%s0] sm:$0xff]
    %v29 = vld [vmem:[%s0 + $0x8] sm:$0xff]
    %v30 = vld [vmem:[%s0 + $0x10] sm:$0xff]
    %v31 = vld [vmem:[%s0 + $0x18] sm:$0xff]
    %v32 = vld [vmem:[%s0 + $0x20] sm:$0xff]
    %v33 = vld [vmem:[%s0 + $0x28] sm:$0xff]
    %v34 = vld [vmem:[%s0 + $0x30] sm:$0xff]
    %v35 = vld [vmem:[%s0 + $0x38] sm:$0xff]
    %v36 = vld [vmem:[%s0 + $0x40] sm:$0xff]
    %v37 = vld [vmem:[%s0 + $0x48] sm:$0xff]
    %v38 = vld [vmem:[%s0 + $0x50] sm:$0xff]
    %v39 = vld [vmem:[%s0 + $0x58] sm:$0xff]
    %v40 = vld [vmem:[%s0 + $0x60] sm:$0xff]
    %v41 = vld [vmem:[%s0 + $0x68] sm:$0xff]
    %v42 = vpack.c.bf16 %v35, %v28
    %v43 = vpack.c.bf16 %v36, %v29
    %v44 = vpack.c.bf16 %v37, %v30
    %v45 = vpack.c.bf16 %v38, %v31
    %v46 = vpack.c.bf16 %v39, %v32
    %v47 = vpack.c.bf16 %v40, %v33
    %v48 = vpack.c.bf16 %v41, %v34
    %v49 = vld [vmem:[%s1] sm:$0xff]
    %v50 = vld [vmem:[%s1 + $0x8] sm:$0xff]
    %v51 = vld [vmem:[%s1 + $0x10] sm:$0xff]
    %v52 = vld [vmem:[%s1 + $0x18] sm:$0xff]
    %v53 = vld [vmem:[%s1 + $0x20] sm:$0xff]
    %v54 = vld [vmem:[%s1 + $0x28] sm:$0xff]
    %v55 = vld [vmem:[%s1 + $0x30] sm:$0xff]
    %v56 = vld [vmem:[%s1 + $0x38] sm:$0xff]
    %v57 = vld [vmem:[%s1 + $0x40] sm:$0xff]
    %v58 = vld [vmem:[%s1 + $0x48] sm:$0xff]
    %v59 = vld [vmem:[%s1 + $0x50] sm:$0xff]
    %v60 = vld [vmem:[%s1 + $0x58] sm:$0xff]
    %v61 = vld [vmem:[%s1 + $0x60] sm:$0xff]
    %v62 = vld [vmem:[%s1 + $0x68] sm:$0xff]
    %v63 = vld [vmem:[%s1 + $0x70] sm:$0xff]
    %v64 = vld [vmem:[%s1 + $0x78] sm:$0xff]
    %v65 = vld [vmem:[%s1 + $0x80] sm:$0xff]
    %v66 = vld [vmem:[%s1 + $0x88] sm:$0xff]
    %v67 = vld [vmem:[%s1 + $0x90] sm:$0xff]
    %v68 = vld [vmem:[%s1 + $0x98] sm:$0xff]
    %v69 = vld [vmem:[%s1 + $0xa0] sm:$0xff]
    %v70 = vld [vmem:[%s1 + $0xa8] sm:$0xff]
    %v71 = vld [vmem:[%s1 + $0xb0] sm:$0xff]
    %v72 = vld [vmem:[%s1 + $0xb8] sm:$0xff]
    %v73 = vld [vmem:[%s1 + $0xc0] sm:$0xff]
    %v74 = vld [vmem:[%s1 + $0xc8] sm:$0xff]
    %v75 = vld [vmem:[%s1 + $0xd0] sm:$0xff]
    %v76 = vld [vmem:[%s1 + $0xd8] sm:$0xff]
    %v77 = vld [vmem:[%s1 + $0xe0] sm:$0xff]
    %v78 = vld [vmem:[%s1 + $0xe8] sm:$0xff]
    %v79 = vld [vmem:[%s1 + $0xf0] sm:$0xff]
    %v80 = vld [vmem:[%s1 + $0xf8] sm:$0xff]
    %v81 = vld [vmem:[%s1 + $0x100] sm:$0xff]
    %v82 = vld [vmem:[%s1 + $0x108] sm:$0xff]
    %v83 = vld [vmem:[%s1 + $0x110] sm:$0xff]
    %v84 = vld [vmem:[%s1 + $0x118] sm:$0xff]
    %v85 = vld [vmem:[%s1 + $0x120] sm:$0xff]
    %v86 = vld [vmem:[%s1 + $0x128] sm:$0xff]
    %v87 = vld [vmem:[%s1 + $0x130] sm:$0xff]
    %v88 = vld [vmem:[%s1 + $0x138] sm:$0xff]
    %v89 = vld [vmem:[%s1 + $0x140] sm:$0xff]
    %v90 = vld [vmem:[%s1 + $0x148] sm:$0xff]
    %v91 = vld [vmem:[%s1 + $0x150] sm:$0xff]
    %v92 = vld [vmem:[%s1 + $0x158] sm:$0xff]
    %v93 = vld [vmem:[%s1 + $0x160] sm:$0xff]
    %v94 = vld [vmem:[%s1 + $0x168] sm:$0xff]
    %v95 = vld [vmem:[%s1 + $0x170] sm:$0xff]
    %v96 = vld [vmem:[%s1 + $0x178] sm:$0xff]
    %v97 = vld [vmem:[%s1 + $0x180] sm:$0xff]
    %v98 = vld [vmem:[%s1 + $0x188] sm:$0xff]
    %v99 = vld [vmem:[%s1 + $0x190] sm:$0xff]
    %v100 = vld [vmem:[%s1 + $0x198] sm:$0xff]
    %v101 = vld [vmem:[%s1 + $0x1a0] sm:$0xff]
    %v102 = vld [vmem:[%s1 + $0x1a8] sm:$0xff]
    %v103 = vld [vmem:[%s1 + $0x1b0] sm:$0xff]
    %v104 = vld [vmem:[%s1 + $0x1b8] sm:$0xff]
    %v105 = vld [vmem:[%s1 + $0x1c0] sm:$0xff]
    %v106 = vld [vmem:[%s1 + $0x1c8] sm:$0xff]
    %v107 = vld [vmem:[%s1 + $0x1d0] sm:$0xff]
    %v108 = vld [vmem:[%s1 + $0x1d8] sm:$0xff]
    %v109 = vld [vmem:[%s1 + $0x1e0] sm:$0xff]
    %v110 = vld [vmem:[%s1 + $0x1e8] sm:$0xff]
    %v111 = vld [vmem:[%s1 + $0x1f0] sm:$0xff]
    %v112 = vld [vmem:[%s1 + $0x1f8] sm:$0xff]
    %v113 = vld [vmem:[%s1 + $0x200] sm:$0xff]
    %v114 = vld [vmem:[%s1 + $0x208] sm:$0xff]
    %v115 = vld [vmem:[%s1 + $0x210] sm:$0xff]
    %v116 = vld [vmem:[%s1 + $0x218] sm:$0xff]
    %v117 = vld [vmem:[%s1 + $0x220] sm:$0xff]
    %v118 = vld [vmem:[%s1 + $0x228] sm:$0xff]
    %v119 = vld [vmem:[%s1 + $0x230] sm:$0xff]
    %v120 = vld [vmem:[%s1 + $0x238] sm:$0xff]
    %v121 = vld [vmem:[%s1 + $0x240] sm:$0xff]
    %v122 = vld [vmem:[%s1 + $0x248] sm:$0xff]
    %v123 = vld [vmem:[%s1 + $0x250] sm:$0xff]
    %v124 = vld [vmem:[%s1 + $0x258] sm:$0xff]
    %v125 = vld [vmem:[%s1 + $0x260] sm:$0xff]
    %v126 = vld [vmem:[%s1 + $0x268] sm:$0xff]
    %v127 = vld [vmem:[%s1 + $0x270] sm:$0xff]
    %v128 = vld [vmem:[%s1 + $0x278] sm:$0xff]
    %v129 = vld [vmem:[%s1 + $0x280] sm:$0xff]
    %v130 = vld [vmem:[%s1 + $0x288] sm:$0xff]
    %v131 = vld [vmem:[%s1 + $0x290] sm:$0xff]
    %v132 = vld [vmem:[%s1 + $0x298] sm:$0xff]
    %v133 = vld [vmem:[%s1 + $0x2a0] sm:$0xff]
    %v134 = vld [vmem:[%s1 + $0x2a8] sm:$0xff]
    %v135 = vld [vmem:[%s1 + $0x2b0] sm:$0xff]
    %v136 = vld [vmem:[%s1 + $0x2b8] sm:$0xff]
    %v137 = vld [vmem:[%s1 + $0x2c0] sm:$0xff]
    %v138 = vld [vmem:[%s1 + $0x2c8] sm:$0xff]
    %v139 = vld [vmem:[%s1 + $0x2d0] sm:$0xff]
    %v140 = vld [vmem:[%s1 + $0x2d8] sm:$0xff]
    %v141 = vld [vmem:[%s1 + $0x2e0] sm:$0xff]
    %v142 = vld [vmem:[%s1 + $0x2e8] sm:$0xff]
    %v143 = vld [vmem:[%s1 + $0x2f0] sm:$0xff]
    %v144 = vld [vmem:[%s1 + $0x2f8] sm:$0xff]
    %v145 = vld [vmem:[%s1 + $0x300] sm:$0xff]
    %v146 = vld [vmem:[%s1 + $0x308] sm:$0xff]
    %v147 = vpack.c.bf16 %v50, %v49
    %v148 = vpack.c.bf16 %v52, %v51
    %v149 = vpack.c.bf16 %v54, %v53
    %v150 = vpack.c.bf16 %v56, %v55
    %v151 = vpack.c.bf16 %v58, %v57
    %v152 = vpack.c.bf16 %v60, %v59
    %v153 = vpack.c.bf16 %v62, %v61
    %v154 = vpack.c.bf16 %v64, %v63
    %v155 = vpack.c.bf16 %v66, %v65
    %v156 = vpack.c.bf16 %v68, %v67
    %v157 = vpack.c.bf16 %v70, %v69
    %v158 = vpack.c.bf16 %v72, %v71
    %v159 = vpack.c.bf16 %v74, %v73
    %v160 = vpack.c.bf16 %v76, %v75
    %v161 = vpack.c.bf16 %v78, %v77
    %v162 = vpack.c.bf16 %v80, %v79
    %v163 = vpack.c.bf16 %v82, %v81
    %v164 = vpack.c.bf16 %v84, %v83
    %v165 = vpack.c.bf16 %v86, %v85
    %v166 = vpack.c.bf16 %v88, %v87
    %v167 = vpack.c.bf16 %v90, %v89
    %v168 = vpack.c.bf16 %v92, %v91
    %v169 = vpack.c.bf16 %v94, %v93
    %v170 = vpack.c.bf16 %v96, %v95
    %v171 = vpack.c.bf16 %v98, %v97
    %v172 = vpack.c.bf16 %v100, %v99
    %v173 = vpack.c.bf16 %v102, %v101
    %v174 = vpack.c.bf16 %v104, %v103
    %v175 = vpack.c.bf16 %v106, %v105
    %v176 = vpack.c.bf16 %v108, %v107
    %v177 = vpack.c.bf16 %v110, %v109
    %v178 = vpack.c.bf16 %v112, %v111
    %v179 = vpack.c.bf16 %v114, %v113
    %v180 = vpack.c.bf16 %v116, %v115
    %v181 = vpack.c.bf16 %v118, %v117
    %v182 = vpack.c.bf16 %v120, %v119
    %v183 = vpack.c.bf16 %v122, %v121
    %v184 = vpack.c.bf16 %v124, %v123
    %v185 = vpack.c.bf16 %v126, %v125
    %v186 = vpack.c.bf16 %v128, %v127
    %v187 = vpack.c.bf16 %v130, %v129
    %v188 = vpack.c.bf16 %v132, %v131
    %v189 = vpack.c.bf16 %v134, %v133
    %v190 = vpack.c.bf16 %v136, %v135
    %v191 = vpack.c.bf16 %v138, %v137
    %v192 = vpack.c.bf16 %v140, %v139
    %v193 = vpack.c.bf16 %v142, %v141
    %v194 = vpack.c.bf16 %v144, %v143
    %v195 = vpack.c.bf16 %v146, %v145
    %v196 = vld [vmem:[%s2] sm:$0x1]
    %v198 = vlaneseq
    %v199 = vshrl.u32 %v198, 7
    %v200 = vsub.s32 0, %v199
    %v201 = vrot.slane %v196, %v200
    %vm203 = vcmask 130048
    %v205 = vsel %vm203, %v48, 0
    %207 = vmatprep.subr.bf16.mxu0 0
    %208 = vmatpush1.bf16.msra.mxu0 %v147
    %209 = vmatprep.subr.bf16.mxu0 0
    %210 = vmatpush1.bf16.msra.mxu0 %v148
    %211 = vmatprep.subr.bf16.mxu0 0
    %212 = vmatpush1.bf16.msra.mxu0 %v149
    %213 = vmatprep.subr.bf16.mxu0 0
    %214 = vmatpush1.bf16.msra.mxu0 %v150
    %215 = vmatprep.subr.bf16.mxu0 0
    %216 = vmatpush1.bf16.msra.mxu0 %v151
    %217 = vmatprep.subr.bf16.mxu0 0
    %218 = vmatpush1.bf16.msra.mxu0 %v152
    %219 = vmatprep.subr.bf16.mxu0 0
    %220 = vmatpush1.bf16.msra.mxu0 %v153
    %221 = vmatprep.subr.bf16.mxu0 0
    %222 = vmatpush1.bf16.msra.mxu0 %v154
    %223 = vmatprep.subr.bf16.mxu0 0
    %224 = vmatpush1.bf16.msra.mxu0 %v155
    %225 = vmatprep.subr.bf16.mxu0 0
    %226 = vmatpush1.bf16.msra.mxu0 %v156
    %227 = vmatprep.subr.bf16.mxu0 0
    %228 = vmatpush1.bf16.msra.mxu0 %v157
    %229 = vmatprep.subr.bf16.mxu0 0
    %230 = vmatpush1.bf16.msra.mxu0 %v158
    %231 = vmatprep.subr.bf16.mxu0 0
    %232 = vmatpush1.bf16.msra.mxu0 %v159
    %233 = vmatprep.subr.bf16.mxu0 0
    %234 = vmatpush1.bf16.msra.mxu0 %v160
    %235 = vmatprep.subr.bf16.mxu0 0
    %236 = vmatpush1.bf16.msra.mxu0 %v161
    %237 = vmatprep.subr.bf16.mxu0 0
    %238 = vmatpush1.bf16.msra.mxu0 %v162
    %239 = vmatprep.mubr.bf16.mxu0 %v43
    %240 = vmatmul.mubr.bf16.gmra.mrb[0].mxu0 %v42
    %v241 = vpop.f32.mrb[0].mxu0
    %v242 = vadd.f32 %v201, %v241
    %v243 = vpop.f32.mrb[0].mxu0
    %v244 = vpop.f32.mrb[0].mxu0
    %v245 = vadd.f32 %v201, %v244
    %v246 = vpop.f32.mrb[0].mxu0
    %247 = vdwg.mxu0
    %248 = vmatprep.subr.bf16.mxu0 0
    %249 = vmatpush1.bf16.msra.mxu0 %v163
    %250 = vmatprep.subr.bf16.mxu0 0
    %251 = vmatpush1.bf16.msra.mxu0 %v164
    %252 = vmatprep.subr.bf16.mxu0 0
    %253 = vmatpush1.bf16.msra.mxu0 %v165
    %254 = vmatprep.subr.bf16.mxu0 0
    %255 = vmatpush1.bf16.msra.mxu0 %v166
    %256 = vmatprep.subr.bf16.mxu0 0
    %257 = vmatpush1.bf16.msra.mxu0 %v167
    %258 = vmatprep.subr.bf16.mxu0 0
    %259 = vmatpush1.bf16.msra.mxu0 %v168
    %260 = vmatprep.subr.bf16.mxu0 0
    %261 = vmatpush1.bf16.msra.mxu0 %v169
    %262 = vmatprep.subr.bf16.mxu0 0
    %263 = vmatpush1.bf16.msra.mxu0 %v170
    %264 = vmatprep.subr.bf16.mxu0 0
    %265 = vmatpush1.bf16.msra.mxu0 %v171
    %266 = vmatprep.subr.bf16.mxu0 0
    %267 = vmatpush1.bf16.msra.mxu0 %v172
    %268 = vmatprep.subr.bf16.mxu0 0
    %269 = vmatpush1.bf16.msra.mxu0 %v173
    %270 = vmatprep.subr.bf16.mxu0 0
    %271 = vmatpush1.bf16.msra.mxu0 %v174
    %272 = vmatprep.subr.bf16.mxu0 0
    %273 = vmatpush1.bf16.msra.mxu0 %v175
    %274 = vmatprep.subr.bf16.mxu0 0
    %275 = vmatpush1.bf16.msra.mxu0 %v176
    %276 = vmatprep.subr.bf16.mxu0 0
    %277 = vmatpush1.bf16.msra.mxu0 %v177
    %278 = vmatprep.subr.bf16.mxu0 0
    %279 = vmatpush1.bf16.msra.mxu0 %v178
    %280 = vmatprep.mubr.bf16.mxu0 %v45
    %281 = vmatmul.mubr.bf16.gmra.mrb[0].mxu0 %v44
    %v282 = vpop.f32.mrb[0].mxu0
    %v283 = vadd.f32 %v242, %v282
    %v284 = vpop.f32.mrb[0].mxu0
    %v285 = vpop.f32.mrb[0].mxu0
    %v286 = vadd.f32 %v245, %v285
    %v287 = vpop.f32.mrb[0].mxu0
    %288 = vdwg.mxu0
    %289 = vmatprep.subr.bf16.mxu0 0
    %290 = vmatpush1.bf16.msra.mxu0 %v179
    %291 = vmatprep.subr.bf16.mxu0 0
    %292 = vmatpush1.bf16.msra.mxu0 %v180
    %293 = vmatprep.subr.bf16.mxu0 0
    %294 = vmatpush1.bf16.msra.mxu0 %v181
    %295 = vmatprep.subr.bf16.mxu0 0
    %296 = vmatpush1.bf16.msra.mxu0 %v182
    %297 = vmatprep.subr.bf16.mxu0 0
    %298 = vmatpush1.bf16.msra.mxu0 %v183
    %299 = vmatprep.subr.bf16.mxu0 0
    %300 = vmatpush1.bf16.msra.mxu0 %v184
    %301 = vmatprep.subr.bf16.mxu0 0
    %302 = vmatpush1.bf16.msra.mxu0 %v185
    %303 = vmatprep.subr.bf16.mxu0 0
    %304 = vmatpush1.bf16.msra.mxu0 %v186
    %305 = vmatprep.subr.bf16.mxu0 0
    %306 = vmatpush1.bf16.msra.mxu0 %v187
    %307 = vmatprep.subr.bf16.mxu0 0
    %308 = vmatpush1.bf16.msra.mxu0 %v188
    %309 = vmatprep.subr.bf16.mxu0 0
    %310 = vmatpush1.bf16.msra.mxu0 %v189
    %311 = vmatprep.subr.bf16.mxu0 0
    %312 = vmatpush1.bf16.msra.mxu0 %v190
    %313 = vmatprep.subr.bf16.mxu0 0
    %314 = vmatpush1.bf16.msra.mxu0 %v191
    %315 = vmatprep.subr.bf16.mxu0 0
    %316 = vmatpush1.bf16.msra.mxu0 %v192
    %317 = vmatprep.subr.bf16.mxu0 0
    %318 = vmatpush1.bf16.msra.mxu0 %v193
    %319 = vmatprep.subr.bf16.mxu0 0
    %320 = vmatpush1.bf16.msra.mxu0 %v194
    %321 = vmatprep.mubr.bf16.mxu0 %v47
    %322 = vmatmul.mubr.bf16.gmra.mrb[0].mxu0 %v46
    %v323 = vpop.f32.mrb[0].mxu0
    %v324 = vadd.f32 %v283, %v323
    %v325 = vpop.f32.mrb[0].mxu0
    %v326 = vpop.f32.mrb[0].mxu0
    %v327 = vadd.f32 %v286, %v326
    %v328 = vpop.f32.mrb[0].mxu0
    %329 = vdwg.mxu0
    %330 = vmatprep.subr.bf16.mxu0 0
    %331 = vmatpush1.bf16.msra.mxu0 %v195
    %332 = vmatprep.subr.bf16.mxu0 0
    %333 = vmatpush1.bf16.msra.mxu0 0
    %334 = vmatprep.subr.bf16.mxu0 0
    %335 = vmatpush1.bf16.msra.mxu0 0
    %336 = vmatprep.subr.bf16.mxu0 0
    %337 = vmatpush1.bf16.msra.mxu0 0
    %338 = vmatprep.subr.bf16.mxu0 0
    %339 = vmatpush1.bf16.msra.mxu0 0
    %340 = vmatprep.subr.bf16.mxu0 0
    %341 = vmatpush1.bf16.msra.mxu0 0
    %342 = vmatprep.subr.bf16.mxu0 0
    %343 = vmatpush1.bf16.msra.mxu0 0
    %344 = vmatprep.subr.bf16.mxu0 0
    %345 = vmatpush1.bf16.msra.mxu0 0
    %346 = vmatprep.subr.bf16.mxu0 0
    %347 = vmatpush1.bf16.msra.mxu0 0
    %348 = vmatprep.subr.bf16.mxu0 0
    %349 = vmatpush1.bf16.msra.mxu0 0
    %350 = vmatprep.subr.bf16.mxu0 0
    %351 = vmatpush1.bf16.msra.mxu0 0
    %352 = vmatprep.subr.bf16.mxu0 0
    %353 = vmatpush1.bf16.msra.mxu0 0
    %354 = vmatprep.subr.bf16.mxu0 0
    %355 = vmatpush1.bf16.msra.mxu0 0
    %356 = vmatprep.subr.bf16.mxu0 0
    %357 = vmatpush1.bf16.msra.mxu0 0
    %358 = vmatprep.subr.bf16.mxu0 0
    %359 = vmatpush1.bf16.msra.mxu0 0
    %360 = vmatprep.subr.bf16.mxu0 0
    %361 = vmatpush1.bf16.msra.mxu0 0
    %362 = vmatprep.mubr.bf16.mxu0 0
    %363 = vmatmul.mubr.bf16.gmra.mrb[0].mxu0 %v205
    %v364 = vpop.f32.mrb[0].mxu0
    %v365 = vadd.f32 %v324, %v364
    %v366 = vpop.f32.mrb[0].mxu0
    %v367 = vpop.f32.mrb[0].mxu0
    %v368 = vadd.f32 %v327, %v367
    %v369 = vpop.f32.mrb[0].mxu0
    %370 = vdwg.mxu0
    %v371 = vmax.f32 %v365, 0.0
    %v372 = vmax.f32 %v368, 0.0
    %v373 = vld [vmem:[%s3] sm:$0xff]
    %v374 = vld [vmem:[%s3 + $0x8] sm:$0xff]
    %v375 = vpack.c.bf16 %v374, %v373
    %v376 = vpack.c.bf16 %v372, %v371
    %v377 = vld [vmem:[%s4] sm:$0x1]
    %v379 = vlaneseq
    %v380 = vshrl.u32 %v379, 7
    %v381 = vsub.s32 0, %v380
    %v382 = vrot.slane %v377, %v381
    %v385 = vsel %vm203, %v376, 0
    %387 = vmatprep.subr.bf16.mxu0 0
    %388 = vmatpush1.bf16.msra.mxu0 %v375
    %389 = vmatprep.subr.bf16.mxu0 0
    %390 = vmatpush1.bf16.msra.mxu0 0
    %391 = vmatprep.subr.bf16.mxu0 0
    %392 = vmatpush1.bf16.msra.mxu0 0
    %393 = vmatprep.subr.bf16.mxu0 0
    %394 = vmatpush1.bf16.msra.mxu0 0
    %395 = vmatprep.subr.bf16.mxu0 0
    %396 = vmatpush1.bf16.msra.mxu0 0
    %397 = vmatprep.subr.bf16.mxu0 0
    %398 = vmatpush1.bf16.msra.mxu0 0
    %399 = vmatprep.subr.bf16.mxu0 0
    %400 = vmatpush1.bf16.msra.mxu0 0
    %401 = vmatprep.subr.bf16.mxu0 0
    %402 = vmatpush1.bf16.msra.mxu0 0
    %403 = vmatprep.subr.bf16.mxu0 0
    %404 = vmatpush1.bf16.msra.mxu0 0
    %405 = vmatprep.subr.bf16.mxu0 0
    %406 = vmatpush1.bf16.msra.mxu0 0
    %407 = vmatprep.subr.bf16.mxu0 0
    %408 = vmatpush1.bf16.msra.mxu0 0
    %409 = vmatprep.subr.bf16.mxu0 0
    %410 = vmatpush1.bf16.msra.mxu0 0
    %411 = vmatprep.subr.bf16.mxu0 0
    %412 = vmatpush1.bf16.msra.mxu0 0
    %413 = vmatprep.subr.bf16.mxu0 0
    %414 = vmatpush1.bf16.msra.mxu0 0
    %415 = vmatprep.subr.bf16.mxu0 0
    %416 = vmatpush1.bf16.msra.mxu0 0
    %417 = vmatprep.subr.bf16.mxu0 0
    %418 = vmatpush1.bf16.msra.mxu0 0
    %419 = vmatprep.mubr.bf16.mxu0 0
    %420 = vmatmul.mubr.bf16.gmra.mrb[0].mxu0 %v385
    %v421 = vpop.f32.mrb[0].mxu0
    %v422 = vadd.f32 %v382, %v421
    %v423 = vpop.f32.mrb[0].mxu0
    %v424 = vpop.f32.mrb[0].mxu0
    %v425 = vadd.f32 %v382, %v424
    %v426 = vpop.f32.mrb[0].mxu0
    %427 = vdwg.mxu0
    %v428 = vmax.f32 %v422, 0.0
    %v429 = vmax.f32 %v425, 0.0
    %v430 = vld [vmem:[%s5] sm:$0xff]
    %v431 = vld [vmem:[%s5 + $0x8] sm:$0xff]
    %v432 = vld [vmem:[%s5 + $0x10] sm:$0xff]
    %v433 = vld [vmem:[%s5 + $0x18] sm:$0xff]
    %v434 = vpack.c.bf16 %v431, %v430
    %v435 = vpack.c.bf16 %v433, %v432
    %v436 = vpack.c.bf16 %v429, %v428
    %v437 = vld [vmem:[%s6] sm:$0x1]
    %v439 = vlaneseq
    %v440 = vshrl.u32 %v439, 7
    %v441 = vsub.s32 0, %v440
    %v442 = vrot.slane %v437, %v441
    %vm444 = vcmask 261120
    %v446 = vsel %vm444, %v436, 0
    %448 = vmatprep.subr.bf16.mxu0 0
    %449 = vmatpush1.bf16.msra.mxu0 %v434
    %450 = vmatprep.subr.bf16.mxu0 0
    %451 = vmatpush1.bf16.msra.mxu0 %v435
    %452 = vmatprep.subr.bf16.mxu0 0
    %453 = vmatpush1.bf16.msra.mxu0 0
    %454 = vmatprep.subr.bf16.mxu0 0
    %455 = vmatpush1.bf16.msra.mxu0 0
    %456 = vmatprep.subr.bf16.mxu0 0
    %457 = vmatpush1.bf16.msra.mxu0 0
    %458 = vmatprep.subr.bf16.mxu0 0
    %459 = vmatpush1.bf16.msra.mxu0 0
    %460 = vmatprep.subr.bf16.mxu0 0
    %461 = vmatpush1.bf16.msra.mxu0 0
    %462 = vmatprep.subr.bf16.mxu0 0
    %463 = vmatpush1.bf16.msra.mxu0 0
    %464 = vmatprep.subr.bf16.mxu0 0
    %465 = vmatpush1.bf16.msra.mxu0 0
    %466 = vmatprep.subr.bf16.mxu0 0
    %467 = vmatpush1.bf16.msra.mxu0 0
    %468 = vmatprep.subr.bf16.mxu0 0
    %469 = vmatpush1.bf16.msra.mxu0 0
    %470 = vmatprep.subr.bf16.mxu0 0
    %471 = vmatpush1.bf16.msra.mxu0 0
    %472 = vmatprep.subr.bf16.mxu0 0
    %473 = vmatpush1.bf16.msra.mxu0 0
    %474 = vmatprep.subr.bf16.mxu0 0
    %475 = vmatpush1.bf16.msra.mxu0 0
    %476 = vmatprep.subr.bf16.mxu0 0
    %477 = vmatpush1.bf16.msra.mxu0 0
    %478 = vmatprep.subr.bf16.mxu0 0
    %479 = vmatpush1.bf16.msra.mxu0 0
    %480 = vmatprep.mubr.bf16.mxu0 0
    %481 = vmatmul.mubr.bf16.gmra.mrb[0].mxu0 %v446
    %v482 = vpop.f32.mrb[0].mxu0
    %v483 = vadd.f32 %v442, %v482
    %v484 = vpop.f32.mrb[0].mxu0
    %v485 = vpop.f32.mrb[0].mxu0
    %v486 = vadd.f32 %v442, %v485
    %v487 = vpop.f32.mrb[0].mxu0
    %488 = vdwg.mxu0
    %vm489 = vcmask 80896
    %490 = vst.msk [vmem:[#allocation2] sm:$0xff] %vm489, %v483
    %491 = vst.msk [vmem:[#allocation2 + $0x8] sm:$0xff] %vm489, %v486
    // Predicated region
    $region30: #{tpu_custom_call.1} parent=1 // pred_check
      _
    $region31: #{tpu_custom_call.1} parent=1 // pred_check_branch
      %493 = sbr.rel (0) target = $region33
    $region32: #{tpu_custom_call.1} parent=1 // pred_region
      %s495 = ssub.s32 256, 128
      %496 = vsyncadd [#allocation3], %s495
      %s497 = sshll.u32 [#allocation2], 4
      %s498 = int_to_ptr.vmem [resolvable:$true] %s497
      %503 = dma.vmem_to_hbm [thread:$0]  %s498, 128, %s7, [#allocation3], 128, 128, 8
    $region33: #{tpu_custom_call.1} parent=1 // pred_fallthru
      _
    // Predicated region
    $region34: #{tpu_custom_call.1} parent=1 // pred_check
      _
    $region35: #{tpu_custom_call.1} parent=1 // pred_check_branch
      %505 = sbr.rel (0) target = $region37
    $region36: #{tpu_custom_call.1} parent=1 // pred_region
      %506 = dma.done [#allocation3], 256
    $region37: #{tpu_custom_call.1} parent=1 // pred_fallthru
      _
    %507 = vsyncpa [#allocation3], 1

</llo_original>
